<compile_context>
chip_gen: v7x
topology: tpu7x:2x2x1
jax: 0.10.0
libtpu: 0.0.40
codegen_flags: <defaults>
</compile_context>

<pallas_src>
import jax
import jax.numpy as jnp
from jax.experimental import pallas as pl
from jax.experimental.pallas import tpu as pltpu

CLS_DIM = 2            # class_embed output dim
REG_DIM = 4            # bbox_embed output dim
OUT_PAD = 128          # lane-dense packed final-GEMM width
_TARGET_TILE_M = 1024  # target rows per grid step (multiple of 8)


def _round_up(x, m):
    return (x + m - 1) // m * m


# ----------------------------------------------------------------------------
# Fused kernel: shared first layer + per-head trunks + one packed final GEMM.
# ----------------------------------------------------------------------------
def _make_fused_head_kernel(num_trunk: int, mid: int):
    def kernel(*refs):
        # refs layout:
        #   x_ref,
        #   [w0_cat, b0_cat]                         (if num_trunk >= 1)
        #   [cls_w_i, cls_b_i, reg_w_i, reg_b_i]     for i = 1 .. num_trunk-1
        #   wf_cls, wf_reg, bf,
        #   cls_out_ref, reg_out_ref
        idx = 0
        x_ref = refs[idx]; idx += 1
        if num_trunk >= 1:
            w0_ref, b0_ref = refs[idx], refs[idx + 1]; idx += 2
        deep = []
        for _ in range(num_trunk - 1):
            deep.append(refs[idx:idx + 4]); idx += 4
        wf_cls_ref, wf_reg_ref, bf_ref = refs[idx], refs[idx + 1], refs[idx + 2]
        idx += 3
        cls_ref, reg_ref = refs[idx], refs[idx + 1]

        x = x_ref[...]                                    # (tile_m, C) bf16

        if num_trunk >= 1:
            # Fused layer 0 for both heads: x @ [cls_w0 | reg_w0].
            h0 = jnp.dot(x, w0_ref[...],
                         preferred_element_type=jnp.float32) + b0_ref[...]
            h0 = jnp.maximum(h0, 0.0)                     # f32 ReLU
            h_cls = h0[:, :mid].astype(jnp.bfloat16)
            h_reg = h0[:, mid:].astype(jnp.bfloat16)
        else:
            h_cls = x
            h_reg = x

        for (cw_ref, cb_ref, rw_ref, rb_ref) in deep:
            h_cls = jnp.maximum(
                jnp.dot(h_cls, cw_ref[...],
                        preferred_element_type=jnp.float32) + cb_ref[...],
                0.0).astype(jnp.bfloat16)
            h_reg = jnp.maximum(
                jnp.dot(h_reg, rw_ref[...],
                        preferred_element_type=jnp.float32) + rb_ref[...],
                0.0).astype(jnp.bfloat16)

        # Packed final layer: cls weights occupy lanes [0:2], reg weights
        # lanes [2:6] of a 128-lane slab (zeros elsewhere), shared packed bias.
        slab = (jnp.dot(h_cls, wf_cls_ref[...], preferred_element_type=jnp.float32)
                + jnp.dot(h_reg, wf_reg_ref[...], preferred_element_type=jnp.float32)
                + bf_ref[...])                            # (tile_m, 128) f32

        cls_ref[...] = slab[:, 0:CLS_DIM]
        reg_logits = slab[:, CLS_DIM:CLS_DIM + REG_DIM]
        # Numerically-stable sigmoid via a single EUP tanh.
        reg_ref[...] = 0.5 * jnp.tanh(0.5 * reg_logits) + 0.5

    return kernel


def _fused_head_pallas(x2d, params, num_trunk, mid):
    """x2d: (M, C) bf16.  Returns (cls (M,2) f32, reg (M,4) f32)."""
    M, C = x2d.shape

    # Balanced row tiling: big tiles, >= 2 steps at production sizes, no pad op.
    n_steps = pl.cdiv(M, _TARGET_TILE_M)
    tile_m = _round_up(pl.cdiv(M, n_steps), 8)
    grid = (pl.cdiv(M, tile_m),)

    in_specs = [pl.BlockSpec((tile_m, C), lambda i: (i, 0))]
    # Weights/biases: full-extent blocks with constant index_map -> fetched
    # once, VMEM-resident across all row tiles.
    for arr in params:
        in_specs.append(pl.BlockSpec(arr.shape, lambda i: (0, 0)))

    out_specs = (pl.BlockSpec((tile_m, CLS_DIM), lambda i: (i, 0)),
                 pl.BlockSpec((tile_m, REG_DIM), lambda i: (i, 0)))
    out_shape = (jax.ShapeDtypeStruct((M, CLS_DIM), jnp.float32),
                 jax.ShapeDtypeStruct((M, REG_DIM), jnp.float32))

    # Advisory cost estimate for XLA scheduling around the custom call.
    w_bytes = sum(int(a.size) * a.dtype.itemsize for a in params)
    flops = sum(2 * M * a.shape[0] * a.shape[1]
                for a in params if a.ndim == 2 and a.shape[0] > 1)
    bytes_accessed = (M * C * x2d.dtype.itemsize + w_bytes
                      + M * (CLS_DIM + REG_DIM) * 4)
    cost = pl.CostEstimate(flops=int(flops),
                           transcendentals=int(M * REG_DIM),
                           bytes_accessed=int(bytes_accessed))

    # VMEM budget: double-buffered x/out tiles + (default 2x) resident weights
    # + live intermediates, clamped to [32 MiB, 64 MiB] (v7x physical).
    x_tile = tile_m * C * x2d.dtype.itemsize
    out_tile = tile_m * (CLS_DIM + REG_DIM) * 4
    inter = tile_m * max(2 * max(mid, 1), OUT_PAD) * 4 * 3
    vmem_est = 2 * (x_tile + out_tile) + 2 * w_bytes + inter + (2 << 20)
    vmem_limit = int(min(max(vmem_est, 32 << 20), 64 << 20))

    kernel = _make_fused_head_kernel(num_trunk, mid)

    cls2d, reg2d = pl.pallas_call(
        kernel,
        out_shape=out_shape,
        grid=grid,
        in_specs=in_specs,
        out_specs=out_specs,
        compiler_params=pltpu.CompilerParams(
            dimension_semantics=(pltpu.PARALLEL,),
            vmem_limit_bytes=vmem_limit),
        cost_estimate=cost,
    )(x2d, *params)
    return cls2d, reg2d


# ----------------------------------------------------------------------------
# TransInMoHead wrapper
# ----------------------------------------------------------------------------
class TransInMoHeadPallas:
    """JAX/Pallas re-implementation of TransInMoHead (synthetic weights)."""

    def __init__(self, in_channel, mid_channel, layer_num, key):
        self.layer_num = layer_num
        self.num_trunk = layer_num - 1
        self.mid = mid_channel

        def init_mlp(key, dims):
            ws, bs = [], []
            for n_in, n_out in zip(dims[:-1], dims[1:]):
                key, kw, kb = jax.random.split(key, 3)
                scale = 1.0 / jnp.sqrt(jnp.float32(n_in))
                # Stored transposed vs PyTorch: (n_in, n_out) so that x @ w.
                ws.append(jax.random.uniform(kw, (n_in, n_out), jnp.float32,
                                             -scale, scale))
                bs.append(jax.random.uniform(kb, (1, n_out), jnp.float32,
                                             -scale, scale))
            return ws, bs

        h = [mid_channel] * (layer_num - 1)
        cls_dims = [in_channel] + h + [CLS_DIM]
        reg_dims = [in_channel] + h + [REG_DIM]

        key_cls, key_reg = jax.random.split(key)
        self.cls_w, self.cls_b = init_mlp(key_cls, cls_dims)   # f32 masters
        self.reg_w, self.reg_b = init_mlp(key_reg, reg_dims)

        # ---- pack kernel parameters: bf16 MXU operands, f32 biases ----------
        params = []
        if self.num_trunk >= 1:
            # Fused layer 0 of both heads.
            w0 = jnp.concatenate([self.cls_w[0], self.reg_w[0]],
                                 axis=1).astype(jnp.bfloat16)
            b0 = jnp.concatenate([self.cls_b[0], self.reg_b[0]], axis=1)  # f32
            params += [w0, b0]
        for i in range(1, self.num_trunk):
            params += [self.cls_w[i].astype(jnp.bfloat16), self.cls_b[i],
                       self.reg_w[i].astype(jnp.bfloat16), self.reg_b[i]]

        # Lane-dense packed final layer: real columns at [0:2] (cls) / [2:6]
        # (reg), zeros elsewhere, plus a shared (1, 128) packed f32 bias.
        last_in = cls_dims[-2]
        wf_cls = (jnp.zeros((last_in, OUT_PAD), jnp.float32)
                  .at[:, 0:CLS_DIM].set(self.cls_w[-1]))
        wf_reg = (jnp.zeros((last_in, OUT_PAD), jnp.float32)
                  .at[:, CLS_DIM:CLS_DIM + REG_DIM].set(self.reg_w[-1]))
        bf = (jnp.zeros((1, OUT_PAD), jnp.float32)
              .at[:, 0:CLS_DIM].set(self.cls_b[-1])
              .at[:, CLS_DIM:CLS_DIM + REG_DIM].set(self.reg_b[-1]))
        params += [wf_cls.astype(jnp.bfloat16), wf_reg.astype(jnp.bfloat16), bf]
        self.params = params

    def __call__(self, fus_feat):
        # fus_feat: (L, B, Q, C) channel-last; only the last decoder layer is
        # consumed downstream, so slice it BEFORE any compute.  bf16 is fed
        # straight into pallas_call (MXU operands; f32 accumulate in-kernel).
        L, B, Q, C = fus_feat.shape
        x2d = fus_feat[-1].reshape(B * Q, C).astype(jnp.bfloat16)

        cls2d, reg2d = _fused_head_pallas(x2d, self.params,
                                          self.num_trunk, self.mid)
        return {"cls": cls2d.reshape(B, Q, CLS_DIM),
                "reg": reg2d.reshape(B, Q, REG_DIM)}


# ----------------------------------------------------------------------------
# Pure-JAX reference with the same dtype discipline (bf16 operands, f32 acc)
# ----------------------------------------------------------------------------
def _mlp_ref(x2d, weights, biases, final_sigmoid):
    h = x2d.astype(jnp.bfloat16)
    n = len(weights)
    for i, (w, b) in enumerate(zip(weights, biases)):
        h = jnp.dot(h, w.astype(jnp.bfloat16),
                    preferred_element_type=jnp.float32) + b
        if i < n - 1:
            h = jnp.maximum(h, 0.0).astype(jnp.bfloat16)
    if final_sigmoid:
        h = 0.5 * jnp.tanh(0.5 * h) + 0.5
    return h


if __name__ == "__main__":
    # Small shapes consistent with the module's forward:
    #   fus_feat: (decoder_layers=2, batch=2, queries=8, in_channel=32)
    L, B, Q = 2, 2, 8
    IN_CHANNEL = 32
    MID_CHANNEL = 32
    LAYER_NUM = 3

    key = jax.random.PRNGKey(0)
    k_feat, k_params = jax.random.split(key)
    fus_feat = jax.random.normal(k_feat, (L, B, Q, IN_CHANNEL), jnp.float32)

    head = TransInMoHeadPallas(IN_CHANNEL, MID_CHANNEL, LAYER_NUM, k_params)

    out = head(fus_feat)
    out = jax.tree_util.tree_map(jax.block_until_ready, out)

    # Sanity check against a pure-JAX reference of the same math (last decoder
    # layer only, matching the module's out = {...[-1]}).
    x2d = fus_feat[-1].reshape(B * Q, IN_CHANNEL)
    cls_ref = _mlp_ref(x2d, head.cls_w, head.cls_b, False).reshape(B, Q, CLS_DIM)
    reg_ref = _mlp_ref(x2d, head.reg_w, head.reg_b, True).reshape(B, Q, REG_DIM)

    assert out["cls"].shape == (B, Q, CLS_DIM)
    assert out["reg"].shape == (B, Q, REG_DIM)
    assert jnp.allclose(out["cls"], cls_ref, atol=2e-3, rtol=2e-3)
    assert jnp.allclose(out["reg"], reg_ref, atol=2e-3, rtol=2e-3)

    print("KERNEL_OK")
</pallas_src>

<mosaic_0001>
module attributes {stable_mosaic.version = 11 : i64} {
  func.func @kernel(%arg0: i32, %arg1: memref<16x32xbf16, #tpu.memory_space<vmem>>, %arg2: memref<32x64xbf16, #tpu.memory_space<vmem>>, %arg3: memref<1x64xf32, #tpu.memory_space<vmem>>, %arg4: memref<32x32xbf16, #tpu.memory_space<vmem>>, %arg5: memref<1x32xf32, #tpu.memory_space<vmem>>, %arg6: memref<32x32xbf16, #tpu.memory_space<vmem>>, %arg7: memref<1x32xf32, #tpu.memory_space<vmem>>, %arg8: memref<32x128xbf16, #tpu.memory_space<vmem>>, %arg9: memref<32x128xbf16, #tpu.memory_space<vmem>>, %arg10: memref<1x128xf32, #tpu.memory_space<vmem>>, %arg11: memref<16x2xf32, #tpu.memory_space<vmem>>, %arg12: memref<16x4xf32, #tpu.memory_space<vmem>>) attributes {dimension_semantics = [#tpu.dimension_semantics<parallel>], iteration_bounds = array<i64: 1>, scalar_prefetch = 0 : i64, scratch_operands = 0 : i64, tpu.core_type = #tpu.core_type<tc>, window_params = [{transform_indices = @transform_0, window_bounds = array<i64: 16, 32>}, {pipeline_mode = #tpu.pipeline_mode<synchronous>, transform_indices = @transform_1, window_bounds = array<i64: 32, 64>}, {pipeline_mode = #tpu.pipeline_mode<synchronous>, transform_indices = @transform_2, window_bounds = array<i64: 1, 64>}, {pipeline_mode = #tpu.pipeline_mode<synchronous>, transform_indices = @transform_3, window_bounds = array<i64: 32, 32>}, {pipeline_mode = #tpu.pipeline_mode<synchronous>, transform_indices = @transform_4, window_bounds = array<i64: 1, 32>}, {pipeline_mode = #tpu.pipeline_mode<synchronous>, transform_indices = @transform_5, window_bounds = array<i64: 32, 32>}, {pipeline_mode = #tpu.pipeline_mode<synchronous>, transform_indices = @transform_6, window_bounds = array<i64: 1, 32>}, {pipeline_mode = #tpu.pipeline_mode<synchronous>, transform_indices = @transform_7, window_bounds = array<i64: 32, 128>}, {pipeline_mode = #tpu.pipeline_mode<synchronous>, transform_indices = @transform_8, window_bounds = array<i64: 32, 128>}, {pipeline_mode = #tpu.pipeline_mode<synchronous>, transform_indices = @transform_9, window_bounds = array<i64: 1, 128>}, {transform_indices = @transform_10, window_bounds = array<i64: 16, 2>}, {transform_indices = @transform_11, window_bounds = array<i64: 16, 4>}]} {
    %c0 = arith.constant 0 : index
    %c0_0 = arith.constant 0 : index
    %0 = vector.load %arg1[%c0, %c0_0] : memref<16x32xbf16, #tpu.memory_space<vmem>>, vector<16x32xbf16>
    %c0_1 = arith.constant 0 : index
    %c0_2 = arith.constant 0 : index
    %1 = vector.load %arg2[%c0_1, %c0_2] : memref<32x64xbf16, #tpu.memory_space<vmem>>, vector<32x64xbf16>
    %cst = arith.constant dense<0.000000e+00> : vector<16x64xf32>
    %2 = tpu.matmul %0, %1, %cst {dimension_numbers = #tpu.dot_dimension_numbers<[1], [0], [0], [1], [0, 0, 1, 1], [], []>} : vector<16x32xbf16>, vector<32x64xbf16>, vector<16x64xf32> -> vector<16x64xf32>
    %c0_3 = arith.constant 0 : index
    %c0_4 = arith.constant 0 : index
    %3 = vector.load %arg3[%c0_3, %c0_4] : memref<1x64xf32, #tpu.memory_space<vmem>>, vector<1x64xf32>
    %4 = vector.broadcast %3 : vector<1x64xf32> to vector<16x64xf32>
    %5 = arith.addf %2, %4 : vector<16x64xf32>
    %cst_5 = arith.constant 0.000000e+00 : f32
    %6 = vector.broadcast %cst_5 : f32 to vector<16x64xf32>
    %7 = arith.maximumf %5, %6 : vector<16x64xf32>
    %8 = vector.extract_strided_slice %7 {offsets = [0, 0], sizes = [16, 32], strides = [1, 1]} : vector<16x64xf32> to vector<16x32xf32>
    %9 = arith.truncf %8 : vector<16x32xf32> to vector<16x32xbf16>
    %10 = vector.extract_strided_slice %7 {offsets = [0, 32], sizes = [16, 32], strides = [1, 1]} : vector<16x64xf32> to vector<16x32xf32>
    %11 = arith.truncf %10 : vector<16x32xf32> to vector<16x32xbf16>
    %c0_6 = arith.constant 0 : index
    %c0_7 = arith.constant 0 : index
    %12 = vector.load %arg4[%c0_6, %c0_7] : memref<32x32xbf16, #tpu.memory_space<vmem>>, vector<32x32xbf16>
    %cst_8 = arith.constant dense<0.000000e+00> : vector<16x32xf32>
    %13 = tpu.matmul %9, %12, %cst_8 {dimension_numbers = #tpu.dot_dimension_numbers<[1], [0], [0], [1], [0, 0, 1, 1], [], []>} : vector<16x32xbf16>, vector<32x32xbf16>, vector<16x32xf32> -> vector<16x32xf32>
    %c0_9 = arith.constant 0 : index
    %c0_10 = arith.constant 0 : index
    %14 = vector.load %arg5[%c0_9, %c0_10] : memref<1x32xf32, #tpu.memory_space<vmem>>, vector<1x32xf32>
    %15 = vector.broadcast %14 : vector<1x32xf32> to vector<16x32xf32>
    %16 = arith.addf %13, %15 : vector<16x32xf32>
    %cst_11 = arith.constant 0.000000e+00 : f32
    %17 = vector.broadcast %cst_11 : f32 to vector<16x32xf32>
    %18 = arith.maximumf %16, %17 : vector<16x32xf32>
    %19 = arith.truncf %18 : vector<16x32xf32> to vector<16x32xbf16>
    %c0_12 = arith.constant 0 : index
    %c0_13 = arith.constant 0 : index
    %20 = vector.load %arg6[%c0_12, %c0_13] : memref<32x32xbf16, #tpu.memory_space<vmem>>, vector<32x32xbf16>
    %cst_14 = arith.constant dense<0.000000e+00> : vector<16x32xf32>
    %21 = tpu.matmul %11, %20, %cst_14 {dimension_numbers = #tpu.dot_dimension_numbers<[1], [0], [0], [1], [0, 0, 1, 1], [], []>} : vector<16x32xbf16>, vector<32x32xbf16>, vector<16x32xf32> -> vector<16x32xf32>
    %c0_15 = arith.constant 0 : index
    %c0_16 = arith.constant 0 : index
    %22 = vector.load %arg7[%c0_15, %c0_16] : memref<1x32xf32, #tpu.memory_space<vmem>>, vector<1x32xf32>
    %23 = vector.broadcast %22 : vector<1x32xf32> to vector<16x32xf32>
    %24 = arith.addf %21, %23 : vector<16x32xf32>
    %cst_17 = arith.constant 0.000000e+00 : f32
    %25 = vector.broadcast %cst_17 : f32 to vector<16x32xf32>
    %26 = arith.maximumf %24, %25 : vector<16x32xf32>
    %27 = arith.truncf %26 : vector<16x32xf32> to vector<16x32xbf16>
    %c0_18 = arith.constant 0 : index
    %c0_19 = arith.constant 0 : index
    %28 = vector.load %arg8[%c0_18, %c0_19] : memref<32x128xbf16, #tpu.memory_space<vmem>>, vector<32x128xbf16>
    %cst_20 = arith.constant dense<0.000000e+00> : vector<16x128xf32>
    %29 = tpu.matmul %19, %28, %cst_20 {dimension_numbers = #tpu.dot_dimension_numbers<[1], [0], [0], [1], [0, 0, 1, 1], [], []>} : vector<16x32xbf16>, vector<32x128xbf16>, vector<16x128xf32> -> vector<16x128xf32>
    %c0_21 = arith.constant 0 : index
    %c0_22 = arith.constant 0 : index
    %30 = vector.load %arg9[%c0_21, %c0_22] : memref<32x128xbf16, #tpu.memory_space<vmem>>, vector<32x128xbf16>
    %cst_23 = arith.constant dense<0.000000e+00> : vector<16x128xf32>
    %31 = tpu.matmul %27, %30, %cst_23 {dimension_numbers = #tpu.dot_dimension_numbers<[1], [0], [0], [1], [0, 0, 1, 1], [], []>} : vector<16x32xbf16>, vector<32x128xbf16>, vector<16x128xf32> -> vector<16x128xf32>
    %32 = arith.addf %29, %31 : vector<16x128xf32>
    %c0_24 = arith.constant 0 : index
    %c0_25 = arith.constant 0 : index
    %33 = vector.load %arg10[%c0_24, %c0_25] : memref<1x128xf32, #tpu.memory_space<vmem>>, vector<1x128xf32>
    %34 = vector.broadcast %33 : vector<1x128xf32> to vector<16x128xf32>
    %35 = arith.addf %32, %34 : vector<16x128xf32>
    %36 = vector.extract_strided_slice %35 {offsets = [0, 0], sizes = [16, 2], strides = [1, 1]} : vector<16x128xf32> to vector<16x2xf32>
    %c0_26 = arith.constant 0 : index
    %c0_27 = arith.constant 0 : index
    %37 = vector.load %arg11[%c0_26, %c0_27] : memref<16x2xf32, #tpu.memory_space<vmem>>, vector<16x2xf32>
    tpu.vector_store %arg11[%c0_26, %c0_27], %36 {strides = array<i32>} : memref<16x2xf32, #tpu.memory_space<vmem>>, vector<16x2xf32>,
    %38 = vector.extract_strided_slice %35 {offsets = [0, 2], sizes = [16, 4], strides = [1, 1]} : vector<16x128xf32> to vector<16x4xf32>
    %cst_28 = arith.constant 5.000000e-01 : f32
    %39 = vector.broadcast %cst_28 : f32 to vector<16x4xf32>
    %40 = arith.mulf %39, %38 : vector<16x4xf32>
    %41 = math.tanh %40 : vector<16x4xf32>
    %cst_29 = arith.constant 5.000000e-01 : f32
    %42 = vector.broadcast %cst_29 : f32 to vector<16x4xf32>
    %43 = arith.mulf %42, %41 : vector<16x4xf32>
    %cst_30 = arith.constant 5.000000e-01 : f32
    %44 = vector.broadcast %cst_30 : f32 to vector<16x4xf32>
    %45 = arith.addf %43, %44 : vector<16x4xf32>
    %c0_31 = arith.constant 0 : index
    %c0_32 = arith.constant 0 : index
    %46 = vector.load %arg12[%c0_31, %c0_32] : memref<16x4xf32, #tpu.memory_space<vmem>>, vector<16x4xf32>
    tpu.vector_store %arg12[%c0_31, %c0_32], %45 {strides = array<i32>} : memref<16x4xf32, #tpu.memory_space<vmem>>, vector<16x4xf32>,
    return
  }
  func.func @transform_0(%arg0: i32) -> (i32, i32) {
    %c0_i32 = arith.constant 0 : i32
    %c0_i32_0 = arith.constant 0 : i32
    return %arg0, %c0_i32 : i32, i32
  }
  func.func @transform_1(%arg0: i32) -> (i32, i32) {
    %c0_i32 = arith.constant 0 : i32
    %c0_i32_0 = arith.constant 0 : i32
    %c0_i32_1 = arith.constant 0 : i32
    return %c0_i32, %c0_i32_0 : i32, i32
  }
  func.func @transform_2(%arg0: i32) -> (i32, i32) {
    %c0_i32 = arith.constant 0 : i32
    %c0_i32_0 = arith.constant 0 : i32
    %c0_i32_1 = arith.constant 0 : i32
    return %c0_i32, %c0_i32_0 : i32, i32
  }
  func.func @transform_3(%arg0: i32) -> (i32, i32) {
    %c0_i32 = arith.constant 0 : i32
    %c0_i32_0 = arith.constant 0 : i32
    %c0_i32_1 = arith.constant 0 : i32
    return %c0_i32, %c0_i32_0 : i32, i32
  }
  func.func @transform_4(%arg0: i32) -> (i32, i32) {
    %c0_i32 = arith.constant 0 : i32
    %c0_i32_0 = arith.constant 0 : i32
    %c0_i32_1 = arith.constant 0 : i32
    return %c0_i32, %c0_i32_0 : i32, i32
  }
  func.func @transform_5(%arg0: i32) -> (i32, i32) {
    %c0_i32 = arith.constant 0 : i32
    %c0_i32_0 = arith.constant 0 : i32
    %c0_i32_1 = arith.constant 0 : i32
    return %c0_i32, %c0_i32_0 : i32, i32
  }
  func.func @transform_6(%arg0: i32) -> (i32, i32) {
    %c0_i32 = arith.constant 0 : i32
    %c0_i32_0 = arith.constant 0 : i32
    %c0_i32_1 = arith.constant 0 : i32
    return %c0_i32, %c0_i32_0 : i32, i32
  }
  func.func @transform_7(%arg0: i32) -> (i32, i32) {
    %c0_i32 = arith.constant 0 : i32
    %c0_i32_0 = arith.constant 0 : i32
    %c0_i32_1 = arith.constant 0 : i32
    return %c0_i32, %c0_i32_0 : i32, i32
  }
  func.func @transform_8(%arg0: i32) -> (i32, i32) {
    %c0_i32 = arith.constant 0 : i32
    %c0_i32_0 = arith.constant 0 : i32
    %c0_i32_1 = arith.constant 0 : i32
    return %c0_i32, %c0_i32_0 : i32, i32
  }
  func.func @transform_9(%arg0: i32) -> (i32, i32) {
    %c0_i32 = arith.constant 0 : i32
    %c0_i32_0 = arith.constant 0 : i32
    %c0_i32_1 = arith.constant 0 : i32
    return %c0_i32, %c0_i32_0 : i32, i32
  }
  func.func @transform_10(%arg0: i32) -> (i32, i32) {
    %c0_i32 = arith.constant 0 : i32
    %c0_i32_0 = arith.constant 0 : i32
    return %arg0, %c0_i32 : i32, i32
  }
  func.func @transform_11(%arg0: i32) -> (i32, i32) {
    %c0_i32 = arith.constant 0 : i32
    %c0_i32_0 = arith.constant 0 : i32
    return %arg0, %c0_i32 : i32, i32
  }
}

</mosaic_0001>

<llo_original>
// kernel: tpu_custom_call.1
$region0: #{tpu_custom_call.1}
  #allocation0 [shape = 'u32[]', space=smem, size = 0x4, offset = 0x4, fixed_abs, tag = 'smem constant byte address 0x4 - core index']
  #allocation1 [shape = 'u32[144,128]{1,0:T(1,128)}', space=vmem, size = 0x12000, scoped, tag = 'internal scratch']
  %s0 = inlined_call_operand.hbm [shape: bf16[16,32], index: 0, kind: input, shape index: {}]
  %s1 = inlined_call_operand.hbm [shape: bf16[32,64], index: 1, kind: input, shape index: {}]
  %s2 = inlined_call_operand.vmem [shape: f32[1,64], index: 2, kind: input, shape index: {}]
  %s3 = inlined_call_operand.hbm [shape: bf16[32,32], index: 3, kind: input, shape index: {}]
  %s4 = inlined_call_operand.vmem [shape: f32[1,32], index: 4, kind: input, shape index: {}]
  %s5 = inlined_call_operand.vmem [shape: bf16[32,32], index: 5, kind: input, shape index: {}]
  %s6 = inlined_call_operand.vmem [shape: f32[1,32], index: 6, kind: input, shape index: {}]
  %s7 = inlined_call_operand.hbm [shape: bf16[32,128], index: 7, kind: input, shape index: {}]
  %s8 = inlined_call_operand.hbm [shape: bf16[32,128], index: 8, kind: input, shape index: {}]
  %s9 = inlined_call_operand.vmem [shape: f32[1,128], index: 9, kind: input, shape index: {}]
  %s10 = inlined_call_operand.vmem [shape: f32[16,2], index: 10, kind: output, shape index: {0}]
  %s11 = inlined_call_operand.vmem [shape: f32[16,4], index: 11, kind: output, shape index: {1}]
  %12 = xla_tuple %s10, %s11
  %s13 = sld [smem:[#allocation0]]
  $region78: #{tpu_custom_call.1} parent=0
    _
  %s15 = ssub.s32 1, %s13
  %s16 = scalar_select 0, %s15, %s13
  $region1: #{tpu_custom_call.1} parent=0
    #allocation2 [shape = 'u8[4096]{0}', space=vmem, size = 0x1000, scoped, tag = 'input window, operand 0, single buffered']
    #allocation3 [shape = 's32[1]{0}', space=sflag, size = 0x4, scoped, tag = 'scoped memory for tpu_custom_call.1']
    #allocation4 [shape = 'u8[8192]{0}', space=vmem, size = 0x2000, scoped, tag = 'input window, operand 1, single buffered']
    #allocation5 [shape = 's32[1]{0}', space=sflag, size = 0x4, scoped, tag = 'scoped memory for tpu_custom_call.1']
    #allocation6 [shape = 'u8[8192]{0}', space=vmem, size = 0x2000, scoped, tag = 'input window, operand 3, single buffered']
    #allocation7 [shape = 'u8[8192]{0}', space=vmem, size = 0x2000, scoped, tag = 'input window, operand 7, single buffered']
    #allocation8 [shape = 's32[1]{0}', space=sflag, size = 0x4, scoped, tag = 'scoped memory for tpu_custom_call.1']
    #allocation9 [shape = 'u8[8192]{0}', space=vmem, size = 0x2000, scoped, tag = 'input window, operand 8, single buffered']
    %17 = vsyncpa [#allocation3], 0
    %18 = vsyncpa [#allocation5], 0
    %19 = vsyncpa [#allocation8], 0
    // Predicated region
    $region2: #{tpu_custom_call.1} parent=1 // pred_check
      _
    $region3: #{tpu_custom_call.1} parent=1 // pred_check_branch
      %21 = sbr.rel (0) target = $region5
    $region4: #{tpu_custom_call.1} parent=1 // pred_region
      %s23 = ssub.s32 128, 128
      %24 = vsyncadd [#allocation3], %s23
      %s25 = sshll.u32 [#allocation2], 4
      %s26 = int_to_ptr.vmem [resolvable:$true] %s25
      %31 = dma.hbm_to_vmem [thread:$0]  %s0, 128, %s26, [#allocation3], 64, 64, 4
    $region5: #{tpu_custom_call.1} parent=1 // pred_fallthru
      _
    // Predicated region
    $region6: #{tpu_custom_call.1} parent=1 // pred_check
      _
    $region7: #{tpu_custom_call.1} parent=1 // pred_check_branch
      %33 = sbr.rel (0) target = $region9
    $region8: #{tpu_custom_call.1} parent=1 // pred_region
      %s35 = ssub.s32 256, 256
      %36 = vsyncadd [#allocation5], %s35
      %s37 = sshll.u32 [#allocation4], 4
      %s38 = int_to_ptr.vmem [resolvable:$true] %s37
      %43 = dma.hbm_to_vmem [thread:$0]  %s1, 256, %s38, [#allocation5], 64, 64, 4
    $region9: #{tpu_custom_call.1} parent=1 // pred_fallthru
      _
    // Predicated region
    $region10: #{tpu_custom_call.1} parent=1 // pred_check
      _
    $region11: #{tpu_custom_call.1} parent=1 // pred_check_branch
      %45 = sbr.rel (0) target = $region13
    $region12: #{tpu_custom_call.1} parent=1 // pred_region
      _
    $region13: #{tpu_custom_call.1} parent=1 // pred_fallthru
      _
    // Predicated region
    $region14: #{tpu_custom_call.1} parent=1 // pred_check
      _
    $region15: #{tpu_custom_call.1} parent=1 // pred_check_branch
      %47 = sbr.rel (0) target = $region17
    $region16: #{tpu_custom_call.1} parent=1 // pred_region
      %s49 = ssub.s32 256, 256
      %50 = vsyncadd [#allocation5], %s49
      %s51 = sshll.u32 [#allocation6], 4
      %s52 = int_to_ptr.vmem [resolvable:$true] %s51
      %57 = dma.hbm_to_vmem [thread:$0]  %s3, 256, %s52, [#allocation5], 64, 64, 4
    $region17: #{tpu_custom_call.1} parent=1 // pred_fallthru
      _
    // Predicated region
    $region18: #{tpu_custom_call.1} parent=1 // pred_check
      _
    $region19: #{tpu_custom_call.1} parent=1 // pred_check_branch
      %59 = sbr.rel (0) target = $region21
    $region20: #{tpu_custom_call.1} parent=1 // pred_region
      _
    $region21: #{tpu_custom_call.1} parent=1 // pred_fallthru
      _
    // Predicated region
    $region22: #{tpu_custom_call.1} parent=1 // pred_check
      _
    $region23: #{tpu_custom_call.1} parent=1 // pred_check_branch
      %61 = sbr.rel (0) target = $region25
    $region24: #{tpu_custom_call.1} parent=1 // pred_region
      _
    $region25: #{tpu_custom_call.1} parent=1 // pred_fallthru
      _
    // Predicated region
    $region26: #{tpu_custom_call.1} parent=1 // pred_check
      _
    $region27: #{tpu_custom_call.1} parent=1 // pred_check_branch
      %63 = sbr.rel (0) target = $region29
    $region28: #{tpu_custom_call.1} parent=1 // pred_region
      _
    $region29: #{tpu_custom_call.1} parent=1 // pred_fallthru
      _
    // Predicated region
    $region30: #{tpu_custom_call.1} parent=1 // pred_check
      _
    $region31: #{tpu_custom_call.1} parent=1 // pred_check_branch
      %65 = sbr.rel (0) target = $region33
    $region32: #{tpu_custom_call.1} parent=1 // pred_region
      %s67 = ssub.s32 256, 256
      %68 = vsyncadd [#allocation8], %s67
      %s69 = sshll.u32 [#allocation7], 4
      %s70 = int_to_ptr.vmem [resolvable:$true] %s69
      %75 = dma.hbm_to_vmem [thread:$0]  %s7, 256, %s70, [#allocation8], 64, 64, 4
    $region33: #{tpu_custom_call.1} parent=1 // pred_fallthru
      _
    // Predicated region
    $region34: #{tpu_custom_call.1} parent=1 // pred_check
      _
    $region35: #{tpu_custom_call.1} parent=1 // pred_check_branch
      %77 = sbr.rel (0) target = $region37
    $region36: #{tpu_custom_call.1} parent=1 // pred_region
      %s79 = ssub.s32 256, 256
      %80 = vsyncadd [#allocation8], %s79
      %s81 = sshll.u32 [#allocation9], 4
      %s82 = int_to_ptr.vmem [resolvable:$true] %s81
      %87 = dma.hbm_to_vmem [thread:$0]  %s8, 256, %s82, [#allocation8], 64, 64, 4
    $region37: #{tpu_custom_call.1} parent=1 // pred_fallthru
      _
    // Predicated region
    $region38: #{tpu_custom_call.1} parent=1 // pred_check
      _
    $region39: #{tpu_custom_call.1} parent=1 // pred_check_branch
      %89 = sbr.rel (0) target = $region41
    $region40: #{tpu_custom_call.1} parent=1 // pred_region
      _
    $region41: #{tpu_custom_call.1} parent=1 // pred_fallthru
      _
    // Predicated region
    $region42: #{tpu_custom_call.1} parent=1 // pred_check
      _
    $region43: #{tpu_custom_call.1} parent=1 // pred_check_branch
      %91 = sbr.rel (0) target = $region45
    $region44: #{tpu_custom_call.1} parent=1 // pred_region
      %92 = dma.done [#allocation3], 128
    $region45: #{tpu_custom_call.1} parent=1 // pred_fallthru
      _
    // Predicated region
    $region46: #{tpu_custom_call.1} parent=1 // pred_check
      _
    $region47: #{tpu_custom_call.1} parent=1 // pred_check_branch
      %94 = sbr.rel (0) target = $region49
    $region48: #{tpu_custom_call.1} parent=1 // pred_region
      %95 = dma.done [#allocation5], 256
    $region49: #{tpu_custom_call.1} parent=1 // pred_fallthru
      _
    // Predicated region
    $region50: #{tpu_custom_call.1} parent=1 // pred_check
      _
    $region51: #{tpu_custom_call.1} parent=1 // pred_check_branch
      %97 = sbr.rel (0) target = $region53
    $region52: #{tpu_custom_call.1} parent=1 // pred_region
      %98 = dma.done [#allocation5], 256
    $region53: #{tpu_custom_call.1} parent=1 // pred_fallthru
      _
    // Predicated region
    $region54: #{tpu_custom_call.1} parent=1 // pred_check
      _
    $region55: #{tpu_custom_call.1} parent=1 // pred_check_branch
      %100 = sbr.rel (0) target = $region57
    $region56: #{tpu_custom_call.1} parent=1 // pred_region
      %101 = dma.done [#allocation8], 256
    $region57: #{tpu_custom_call.1} parent=1 // pred_fallthru
      _
    // Predicated region
    $region58: #{tpu_custom_call.1} parent=1 // pred_check
      _
    $region59: #{tpu_custom_call.1} parent=1 // pred_check_branch
      %103 = sbr.rel (0) target = $region61
    $region60: #{tpu_custom_call.1} parent=1 // pred_region
      %104 = dma.done [#allocation8], 256
    $region61: #{tpu_custom_call.1} parent=1 // pred_fallthru
      _
    %v106 = vld [vmem:[#allocation2] sm:$0xf]
    %v107 = vld [vmem:[#allocation2 + $0x4] sm:$0xf]
    %v108 = vld [vmem:[#allocation4] sm:$0xf]
    %v109 = vld [vmem:[#allocation4 + $0x4] sm:$0xf]
    %v110 = vld [vmem:[#allocation4 + $0x8] sm:$0xf]
    %v111 = vld [vmem:[#allocation4 + $0xc] sm:$0xf]
    %v112 = vld [vmem:[%s2] sm:$0x1]
    %v114 = vlaneseq
    %v115 = vshrl.u32 %v114, 7
    %v116 = vsub.s32 0, %v115
    %v117 = vrot.slane %v112, %v116
    %v121 = vunpack.c.l.b16 %v106
    %v122 = vunpack.c.l.b16 %v107
    %v123 = vpack.c.b16 %v122, %v121
    %v128 = vunpack.c.l.b16 %v108
    %v129 = vunpack.c.l.b16 %v109
    %v130 = vunpack.c.l.b16 %v110
    %v131 = vunpack.c.l.b16 %v111
    %v132 = vpack.c.b16 %v129, %v128
    %v133 = vpack.c.b16 %v131, %v130
    %vm136 = vcmask 261120
    %v138 = vsel %vm136, %v123, 0
    %140 = vmatprep.subr.bf16.mxu0 0
    %141 = vmatpush1.bf16.msra.mxu0 %v132
    %142 = vmatprep.subr.bf16.mxu0 0
    %143 = vmatpush1.bf16.msra.mxu0 %v133
    %144 = vmatprep.subr.bf16.mxu0 0
    %145 = vmatpush1.bf16.msra.mxu0 0
    %146 = vmatprep.subr.bf16.mxu0 0
    %147 = vmatpush1.bf16.msra.mxu0 0
    %148 = vmatprep.subr.bf16.mxu0 0
    %149 = vmatpush1.bf16.msra.mxu0 0
    %150 = vmatprep.subr.bf16.mxu0 0
    %151 = vmatpush1.bf16.msra.mxu0 0
    %152 = vmatprep.subr.bf16.mxu0 0
    %153 = vmatpush1.bf16.msra.mxu0 0
    %154 = vmatprep.subr.bf16.mxu0 0
    %155 = vmatpush1.bf16.msra.mxu0 0
    %156 = vmatprep.subr.bf16.mxu0 0
    %157 = vmatpush1.bf16.msra.mxu0 0
    %158 = vmatprep.subr.bf16.mxu0 0
    %159 = vmatpush1.bf16.msra.mxu0 0
    %160 = vmatprep.subr.bf16.mxu0 0
    %161 = vmatpush1.bf16.msra.mxu0 0
    %162 = vmatprep.subr.bf16.mxu0 0
    %163 = vmatpush1.bf16.msra.mxu0 0
    %164 = vmatprep.subr.bf16.mxu0 0
    %165 = vmatpush1.bf16.msra.mxu0 0
    %166 = vmatprep.subr.bf16.mxu0 0
    %167 = vmatpush1.bf16.msra.mxu0 0
    %168 = vmatprep.subr.bf16.mxu0 0
    %169 = vmatpush1.bf16.msra.mxu0 0
    %170 = vmatprep.subr.bf16.mxu0 0
    %171 = vmatpush1.bf16.msra.mxu0 0
    %172 = vmatprep.mubr.bf16.mxu0 0
    %173 = vmatmul.mubr.bf16.gmra.mrb[0].mxu0 %v138
    %v174 = vpop.f32.mrb[0].mxu0
    %v175 = vadd.f32 %v117, %v174
    %v176 = vpop.f32.mrb[0].mxu0
    %v177 = vpop.f32.mrb[0].mxu0
    %v178 = vadd.f32 %v117, %v177
    %v179 = vpop.f32.mrb[0].mxu0
    %180 = vdwg.mxu0
    %v181 = vmax.f32 %v175, 0.0
    %v182 = vmax.f32 %v178, 0.0
    %v183 = vpack.c.bf16 %v182, %v181
    %v184 = vld [vmem:[#allocation6] sm:$0xf]
    %v185 = vld [vmem:[#allocation6 + $0x4] sm:$0xf]
    %v186 = vld [vmem:[#allocation6 + $0x8] sm:$0xf]
    %v187 = vld [vmem:[#allocation6 + $0xc] sm:$0xf]
    %v188 = vld [vmem:[%s4] sm:$0x1]
    %v190 = vlaneseq
    %v191 = vshrl.u32 %v190, 7
    %v192 = vsub.s32 0, %v191
    %v193 = vrot.slane %v188, %v192
    %v199 = vunpack.c.l.b16 %v184
    %v200 = vunpack.c.l.b16 %v185
    %v201 = vunpack.c.l.b16 %v186
    %v202 = vunpack.c.l.b16 %v187
    %v203 = vpack.c.b16 %v200, %v199
    %v204 = vpack.c.b16 %v202, %v201
    %v208 = vsel %vm136, %v183, 0
    %210 = vmatprep.subr.bf16.mxu0 0
    %211 = vmatpush1.bf16.msra.mxu0 %v203
    %212 = vmatprep.subr.bf16.mxu0 0
    %213 = vmatpush1.bf16.msra.mxu0 %v204
    %214 = vmatprep.subr.bf16.mxu0 0
    %215 = vmatpush1.bf16.msra.mxu0 0
    %216 = vmatprep.subr.bf16.mxu0 0
    %217 = vmatpush1.bf16.msra.mxu0 0
    %218 = vmatprep.subr.bf16.mxu0 0
    %219 = vmatpush1.bf16.msra.mxu0 0
    %220 = vmatprep.subr.bf16.mxu0 0
    %221 = vmatpush1.bf16.msra.mxu0 0
    %222 = vmatprep.subr.bf16.mxu0 0
    %223 = vmatpush1.bf16.msra.mxu0 0
    %224 = vmatprep.subr.bf16.mxu0 0
    %225 = vmatpush1.bf16.msra.mxu0 0
    %226 = vmatprep.subr.bf16.mxu0 0
    %227 = vmatpush1.bf16.msra.mxu0 0
    %228 = vmatprep.subr.bf16.mxu0 0
    %229 = vmatpush1.bf16.msra.mxu0 0
    %230 = vmatprep.subr.bf16.mxu0 0
    %231 = vmatpush1.bf16.msra.mxu0 0
    %232 = vmatprep.subr.bf16.mxu0 0
    %233 = vmatpush1.bf16.msra.mxu0 0
    %234 = vmatprep.subr.bf16.mxu0 0
    %235 = vmatpush1.bf16.msra.mxu0 0
    %236 = vmatprep.subr.bf16.mxu0 0
    %237 = vmatpush1.bf16.msra.mxu0 0
    %238 = vmatprep.subr.bf16.mxu0 0
    %239 = vmatpush1.bf16.msra.mxu0 0
    %240 = vmatprep.subr.bf16.mxu0 0
    %241 = vmatpush1.bf16.msra.mxu0 0
    %242 = vmatprep.mubr.bf16.mxu0 0
    %243 = vmatmul.mubr.bf16.gmra.mrb[0].mxu0 %v208
    %v244 = vpop.f32.mrb[0].mxu0
    %v245 = vadd.f32 %v193, %v244
    %v246 = vpop.f32.mrb[0].mxu0
    %v247 = vpop.f32.mrb[0].mxu0
    %v248 = vadd.f32 %v193, %v247
    %v249 = vpop.f32.mrb[0].mxu0
    %250 = vdwg.mxu0
    %v251 = vmax.f32 %v245, 0.0
    %v252 = vmax.f32 %v248, 0.0
    %v253 = vpack.c.bf16 %v252, %v251
    %v254 = vld [vmem:[%s5] sm:$0xf]
    %v255 = vld [vmem:[%s5 + $0x4] sm:$0xf]
    %v256 = vld [vmem:[%s5 + $0x8] sm:$0xf]
    %v257 = vld [vmem:[%s5 + $0xc] sm:$0xf]
    %v258 = vld [vmem:[%s6] sm:$0x1]
    %v260 = vlaneseq
    %v261 = vshrl.u32 %v260, 7
    %v262 = vsub.s32 0, %v261
    %v263 = vrot.slane %v258, %v262
    %266 = vrot.lane.b32.xlu0 %v183, 96
    %v267 = vpop.permute.xlu0 %266
    %v272 = vunpack.c.l.b16 %v254
    %v273 = vunpack.c.l.b16 %v255
    %v274 = vunpack.c.l.b16 %v256
    %v275 = vunpack.c.l.b16 %v257
    %v276 = vpack.c.b16 %v273, %v272
    %v277 = vpack.c.b16 %v275, %v274
    %v281 = vsel %vm136, %v267, 0
    %283 = vmatprep.subr.bf16.mxu0 0
    %284 = vmatpush1.bf16.msra.mxu0 %v276
    %285 = vmatprep.subr.bf16.mxu0 0
    %286 = vmatpush1.bf16.msra.mxu0 %v277
    %287 = vmatprep.subr.bf16.mxu0 0
    %288 = vmatpush1.bf16.msra.mxu0 0
    %289 = vmatprep.subr.bf16.mxu0 0
    %290 = vmatpush1.bf16.msra.mxu0 0
    %291 = vmatprep.subr.bf16.mxu0 0
    %292 = vmatpush1.bf16.msra.mxu0 0
    %293 = vmatprep.subr.bf16.mxu0 0
    %294 = vmatpush1.bf16.msra.mxu0 0
    %295 = vmatprep.subr.bf16.mxu0 0
    %296 = vmatpush1.bf16.msra.mxu0 0
    %297 = vmatprep.subr.bf16.mxu0 0
    %298 = vmatpush1.bf16.msra.mxu0 0
    %299 = vmatprep.subr.bf16.mxu0 0
    %300 = vmatpush1.bf16.msra.mxu0 0
    %301 = vmatprep.subr.bf16.mxu0 0
    %302 = vmatpush1.bf16.msra.mxu0 0
    %303 = vmatprep.subr.bf16.mxu0 0
    %304 = vmatpush1.bf16.msra.mxu0 0
    %305 = vmatprep.subr.bf16.mxu0 0
    %306 = vmatpush1.bf16.msra.mxu0 0
    %307 = vmatprep.subr.bf16.mxu0 0
    %308 = vmatpush1.bf16.msra.mxu0 0
    %309 = vmatprep.subr.bf16.mxu0 0
    %310 = vmatpush1.bf16.msra.mxu0 0
    %311 = vmatprep.subr.bf16.mxu0 0
    %312 = vmatpush1.bf16.msra.mxu0 0
    %313 = vmatprep.subr.bf16.mxu0 0
    %314 = vmatpush1.bf16.msra.mxu0 0
    %315 = vmatprep.mubr.bf16.mxu0 0
    %316 = vmatmul.mubr.bf16.gmra.mrb[0].mxu0 %v281
    %v317 = vpop.f32.mrb[0].mxu0
    %v318 = vadd.f32 %v263, %v317
    %v319 = vpop.f32.mrb[0].mxu0
    %v320 = vpop.f32.mrb[0].mxu0
    %v321 = vadd.f32 %v263, %v320
    %v322 = vpop.f32.mrb[0].mxu0
    %323 = vdwg.mxu0
    %v324 = vmax.f32 %v318, 0.0
    %v325 = vmax.f32 %v321, 0.0
    %v326 = vpack.c.bf16 %v325, %v324
    %v327 = vld [vmem:[#allocation7] sm:$0xf]
    %v328 = vld [vmem:[#allocation7 + $0x4] sm:$0xf]
    %v329 = vld [vmem:[#allocation7 + $0x8] sm:$0xf]
    %v330 = vld [vmem:[#allocation7 + $0xc] sm:$0xf]
    %v331 = vld [vmem:[#allocation9] sm:$0xf]
    %v332 = vld [vmem:[#allocation9 + $0x4] sm:$0xf]
    %v333 = vld [vmem:[#allocation9 + $0x8] sm:$0xf]
    %v334 = vld [vmem:[#allocation9 + $0xc] sm:$0xf]
    %v339 = vunpack.c.l.b16 %v331
    %v340 = vunpack.c.l.b16 %v332
    %v341 = vunpack.c.l.b16 %v333
    %v342 = vunpack.c.l.b16 %v334
    %v343 = vpack.c.b16 %v340, %v339
    %v344 = vpack.c.b16 %v342, %v341
    %v348 = vsel %vm136, %v326, 0
    %350 = vmatprep.subr.bf16.mxu0 0
    %351 = vmatpush1.bf16.msra.mxu0 %v343
    %352 = vmatprep.subr.bf16.mxu0 0
    %353 = vmatpush1.bf16.msra.mxu0 %v344
    %354 = vmatprep.subr.bf16.mxu0 0
    %355 = vmatpush1.bf16.msra.mxu0 0
    %356 = vmatprep.subr.bf16.mxu0 0
    %357 = vmatpush1.bf16.msra.mxu0 0
    %358 = vmatprep.subr.bf16.mxu0 0
    %359 = vmatpush1.bf16.msra.mxu0 0
    %360 = vmatprep.subr.bf16.mxu0 0
    %361 = vmatpush1.bf16.msra.mxu0 0
    %362 = vmatprep.subr.bf16.mxu0 0
    %363 = vmatpush1.bf16.msra.mxu0 0
    %364 = vmatprep.subr.bf16.mxu0 0
    %365 = vmatpush1.bf16.msra.mxu0 0
    %366 = vmatprep.subr.bf16.mxu0 0
    %367 = vmatpush1.bf16.msra.mxu0 0
    %368 = vmatprep.subr.bf16.mxu0 0
    %369 = vmatpush1.bf16.msra.mxu0 0
    %370 = vmatprep.subr.bf16.mxu0 0
    %371 = vmatpush1.bf16.msra.mxu0 0
    %372 = vmatprep.subr.bf16.mxu0 0
    %373 = vmatpush1.bf16.msra.mxu0 0
    %374 = vmatprep.subr.bf16.mxu0 0
    %375 = vmatpush1.bf16.msra.mxu0 0
    %376 = vmatprep.subr.bf16.mxu0 0
    %377 = vmatpush1.bf16.msra.mxu0 0
    %378 = vmatprep.subr.bf16.mxu0 0
    %379 = vmatpush1.bf16.msra.mxu0 0
    %380 = vmatprep.subr.bf16.mxu0 0
    %381 = vmatpush1.bf16.msra.mxu0 0
    %382 = vmatprep.mubr.bf16.mxu0 0
    %383 = vmatmul.mubr.bf16.gmra.mrb[0].mxu0 %v348
    %v384 = vpop.f32.mrb[0].mxu0
    %v385 = vadd.f32 0.0, %v384
    %v386 = vpop.f32.mrb[0].mxu0
    %v387 = vpop.f32.mrb[0].mxu0
    %v388 = vadd.f32 0.0, %v387
    %v389 = vpop.f32.mrb[0].mxu0
    %390 = vdwg.mxu0
    %v395 = vunpack.c.l.b16 %v327
    %v396 = vunpack.c.l.b16 %v328
    %v397 = vunpack.c.l.b16 %v329
    %v398 = vunpack.c.l.b16 %v330
    %v399 = vpack.c.b16 %v396, %v395
    %v400 = vpack.c.b16 %v398, %v397
    %v404 = vsel %vm136, %v253, 0
    %406 = vmatprep.subr.bf16.mxu0 0
    %407 = vmatpush1.bf16.msra.mxu0 %v399
    %408 = vmatprep.subr.bf16.mxu0 0
    %409 = vmatpush1.bf16.msra.mxu0 %v400
    %410 = vmatprep.subr.bf16.mxu0 0
    %411 = vmatpush1.bf16.msra.mxu0 0
    %412 = vmatprep.subr.bf16.mxu0 0
    %413 = vmatpush1.bf16.msra.mxu0 0
    %414 = vmatprep.subr.bf16.mxu0 0
    %415 = vmatpush1.bf16.msra.mxu0 0
    %416 = vmatprep.subr.bf16.mxu0 0
    %417 = vmatpush1.bf16.msra.mxu0 0
    %418 = vmatprep.subr.bf16.mxu0 0
    %419 = vmatpush1.bf16.msra.mxu0 0
    %420 = vmatprep.subr.bf16.mxu0 0
    %421 = vmatpush1.bf16.msra.mxu0 0
    %422 = vmatprep.subr.bf16.mxu0 0
    %423 = vmatpush1.bf16.msra.mxu0 0
    %424 = vmatprep.subr.bf16.mxu0 0
    %425 = vmatpush1.bf16.msra.mxu0 0
    %426 = vmatprep.subr.bf16.mxu0 0
    %427 = vmatpush1.bf16.msra.mxu0 0
    %428 = vmatprep.subr.bf16.mxu0 0
    %429 = vmatpush1.bf16.msra.mxu0 0
    %430 = vmatprep.subr.bf16.mxu0 0
    %431 = vmatpush1.bf16.msra.mxu0 0
    %432 = vmatprep.subr.bf16.mxu0 0
    %433 = vmatpush1.bf16.msra.mxu0 0
    %434 = vmatprep.subr.bf16.mxu0 0
    %435 = vmatpush1.bf16.msra.mxu0 0
    %436 = vmatprep.subr.bf16.mxu0 0
    %437 = vmatpush1.bf16.msra.mxu0 0
    %438 = vmatprep.mubr.bf16.mxu0 0
    %439 = vmatmul.mubr.bf16.gmra.mrb[0].mxu0 %v404
    %v440 = vpop.f32.mrb[0].mxu0
    %v441 = vadd.f32 %v385, %v440
    %v442 = vpop.f32.mrb[0].mxu0
    %v443 = vpop.f32.mrb[0].mxu0
    %v444 = vadd.f32 %v388, %v443
    %v445 = vpop.f32.mrb[0].mxu0
    %446 = vdwg.mxu0
    %v447 = vld [vmem:[%s9] sm:$0x1]
    %v449 = vlaneseq
    %v450 = vshrl.u32 %v449, 7
    %v451 = vsub.s32 0, %v450
    %v452 = vrot.slane %v447, %v451
    %v454 = vadd.f32 %v441, %v452
    %v455 = vadd.f32 %v444, %v452
    %vm456 = vcmask 15360
    %457 = vst.msk [vmem:[%s10] sm:$0xff] %vm456, %v454
    %458 = vst.msk [vmem:[%s10 + $0x8] sm:$0xff] %vm456, %v455
    %v459 = vmul.f32 %v454, 0.5
    %v460 = vmul.f32 %v455, 0.5
    %v461 = vtanh.pop %v459
    %v462 = vtanh.pop %v460
    %v463 = vmul.f32 %v461, 0.5
    %v464 = vmul.f32 %v462, 0.5
    %v465 = vadd.f32 %v463, 0.5
    %v466 = vadd.f32 %v464, 0.5
    %469 = vrot.lane.b32.xlu0 %v465, 126
    %v470 = vpop.permute.xlu0 %469
    %471 = vrot.lane.b32.xlu0 %v466, 126
    %v472 = vpop.permute.xlu0 %471
    %vm475 = vcmask 31744
    %476 = vst.msk [vmem:[%s11] sm:$0xff] %vm475, %v470
    %477 = vst.msk [vmem:[%s11 + $0x8] sm:$0xff] %vm475, %v472
    // Predicated region
    $region62: #{tpu_custom_call.1} parent=1 // pred_check
      _
    $region63: #{tpu_custom_call.1} parent=1 // pred_check_branch
      %479 = sbr.rel (0) target = $region65
    $region64: #{tpu_custom_call.1} parent=1 // pred_region
      _
    $region65: #{tpu_custom_call.1} parent=1 // pred_fallthru
      _
    // Predicated region
    $region66: #{tpu_custom_call.1} parent=1 // pred_check
      _
    $region67: #{tpu_custom_call.1} parent=1 // pred_check_branch
      %481 = sbr.rel (0) target = $region69
    $region68: #{tpu_custom_call.1} parent=1 // pred_region
      _
    $region69: #{tpu_custom_call.1} parent=1 // pred_fallthru
      _
    // Predicated region
    $region70: #{tpu_custom_call.1} parent=1 // pred_check
      _
    $region71: #{tpu_custom_call.1} parent=1 // pred_check_branch
      %483 = sbr.rel (0) target = $region73
    $region72: #{tpu_custom_call.1} parent=1 // pred_region
      _
    $region73: #{tpu_custom_call.1} parent=1 // pred_fallthru
      _
    // Predicated region
    $region74: #{tpu_custom_call.1} parent=1 // pred_check
      _
    $region75: #{tpu_custom_call.1} parent=1 // pred_check_branch
      %485 = sbr.rel (0) target = $region77
    $region76: #{tpu_custom_call.1} parent=1 // pred_region
      _
    $region77: #{tpu_custom_call.1} parent=1 // pred_fallthru
      _
    %486 = vsyncpa [#allocation3], 1
    %487 = vsyncpa [#allocation5], 1
    %488 = vsyncpa [#allocation8], 1

</llo_original>
